<compile_context>
chip_gen: v7x
topology: tpu7x:2x2x1
jax: 0.10.0
libtpu: 0.0.40
codegen_flags: <defaults>
</compile_context>

<pallas_src>
import functools

import jax
import jax.numpy as jnp
from jax import lax
from jax.experimental import pallas as pl
from jax.experimental.pallas import tpu as pltpu

T_ALPHA = 0.98
EPS = 0.001
_NEG_BIG = -1e30
_INT_MAX = 2147483647
_CONTRACT_E = (((1,), (1,)), ((), ()))   # contract the embedding (last) dim of both operands

# Columns of the merged (N, 8) f32 accumulator scratch.
_M, _L, _TGT, _COS = 0, 1, 2, 3


def awl_softmax_kernel(x_ref, w_ref, inv_wn_ref, labels_ref, margin_ref, inv_xn_ref,
                       bias_ref, lam_ref,                       # inputs
                       out_ref,                                 # (2,) SMEM: loss, prec1
                       acc_ref, best_idx_ref,                   # scratch
                       *, n_classes, has_padding):
    c = pl.program_id(0)
    num_c_tiles = pl.num_programs(0)

    x = x_ref[...]                        # (N, E) matmul dtype, VMEM-resident across tiles
    labels = labels_ref[...]              # (N, 1) int32
    N = x.shape[0]
    C_t = w_ref.shape[0]

    # ---------------- first class tile: init merged accumulators ----------------
    @pl.when(c == 0)
    def _init():
        col = lax.broadcasted_iota(jnp.int32, acc_ref.shape, 1)
        acc_ref[...] = jnp.where(col == _M, jnp.float32(_NEG_BIG), jnp.float32(0.0))
        best_idx_ref[...] = jnp.zeros_like(best_idx_ref)

    # ---------------- per-tile work: one matmul, derived cosine, online LSE ----------------
    output = lax.dot_general(x, w_ref[...], _CONTRACT_E,
                             preferred_element_type=jnp.float32)        # (N, C_t) f32
    # cosine derived from the same matmul via precomputed inverse norms (padded classes -> 0).
    cosine = jnp.clip(output * inv_xn_ref[...] * inv_wn_ref[...], -1.0 + EPS, 1.0 - EPS)

    col_ids = c * C_t + lax.broadcasted_iota(jnp.int32, (N, C_t), 1)
    is_label = col_ids == labels                                        # (N, C_t) bool
    logits = jnp.where(is_label, output, cosine)
    if has_padding:
        # 0 for valid classes, -1e30 for padded ones (only non-zero on the last tile).
        logits = logits + bias_ref[...]

    # Online log-sum-exp across class tiles (flash-softmax style).
    tile_max = jnp.max(logits, axis=1, keepdims=True)                   # (N, 1)
    m_prev = acc_ref[:, _M:_M + 1]
    m_new = jnp.maximum(m_prev, tile_max)
    l_new = (acc_ref[:, _L:_L + 1] * jnp.exp(m_prev - m_new)
             + jnp.sum(jnp.exp(logits - m_new), axis=1, keepdims=True))
    # Target raw logit (only the tile containing the label contributes).
    tgt_new = acc_ref[:, _TGT:_TGT + 1] + jnp.sum(jnp.where(is_label, output, 0.0),
                                                  axis=1, keepdims=True)
    # Per-row cosine sum -> closed-form sum of the adaptive weights.
    cos_new = acc_ref[:, _COS:_COS + 1] + jnp.sum(cosine, axis=1, keepdims=True)

    # Running argmax (best value == running max m_run) with torch first-index tie-break.
    tile_arg = jnp.min(jnp.where(logits == tile_max, col_ids, jnp.int32(_INT_MAX)),
                       axis=1, keepdims=True)
    best_new = jnp.where(tile_max > m_prev, tile_arg, best_idx_ref[...])

    acc_ref[:, _M:_M + 1] = m_new
    acc_ref[:, _L:_L + 1] = l_new
    acc_ref[:, _TGT:_TGT + 1] = tgt_new
    acc_ref[:, _COS:_COS + 1] = cos_new
    best_idx_ref[...] = best_new

    # ---------------- last class tile: finalize scalar outputs ----------------
    @pl.when(c == num_c_tiles - 1)
    def _finalize():
        lam = lam_ref[0]
        ce = m_new + jnp.log(l_new) - tgt_new                           # -log p_target, (N, 1)
        cf = jnp.float32(n_classes)
        # sum_j weights[i, j] = lam * ms_i * (C - sum_j cos_ij) + C * (lam + 1)
        w_sum = lam * margin_ref[...] * (cf - cos_new) + cf * (lam + 1.0)
        out_ref[0] = jnp.sum(ce * w_sum) / (jnp.float32(N) * cf)        # mean over N*C
        correct = (best_new == labels).astype(jnp.float32)
        out_ref[1] = 100.0 * jnp.sum(correct) / jnp.float32(N)


def awl_softmax_loss(x, weight, labels, batch_mean, ith_iter, total_iter, *,
                     block_c=256, matmul_dtype=None):
    """Returns (loss, prec1, new_batch_mean).

    block_c: class-tile width. Prefer multiples of 256 on v6e/v7x, multiples of 128 on v5e.
    matmul_dtype: optional MXU operand dtype; pass jnp.bfloat16 when x/weight arrive as f32
        to run the matmul at bf16 peak (accumulation and all norm/softmax math stay f32).
    """
    N, E = x.shape
    C = weight.shape[0]

    # Batch statistics & inverse norms hoisted out of the kernel: tiny O(N*E + C*E)
    # reductions that XLA fuses with the pad/cast below. This keeps f32 copies of x/w out
    # of the kernel and is the prerequisite for a future parallel batch-tile axis.
    xf = x.astype(jnp.float32)
    x_sumsq = jnp.sum(xf * xf, axis=1, keepdims=True)                    # (N, 1)
    safe = jnp.clip(jnp.sqrt(x_sumsq), 0.001, 200.0)
    bm_prev = jnp.asarray(batch_mean, jnp.float32).reshape(())
    new_bm = jnp.mean(safe) * T_ALPHA + (1.0 - T_ALPHA) * bm_prev        # running-buffer update
    margin = jnp.where(safe > new_bm, 1.0, -1.0).astype(jnp.float32)     # (N, 1) margin_scaler
    inv_xn = lax.rsqrt(jnp.maximum(x_sumsq, 1e-24))                      # == 1 / max(||x||, 1e-12)

    wf = weight.astype(jnp.float32)
    inv_wn = lax.rsqrt(jnp.maximum(jnp.sum(wf * wf, axis=1), 1e-24))     # (C,)

    # Pad the class axis so it tiles evenly; padded classes get an additive -1e30 bias.
    c_pad = pl.cdiv(C, block_c) * block_c
    has_padding = c_pad != C
    if has_padding:
        weight = jnp.pad(weight, ((0, c_pad - C), (0, 0)))
        inv_wn = jnp.pad(inv_wn, (0, c_pad - C))
    inv_wn = inv_wn.reshape(1, c_pad)
    bias = jnp.where(jnp.arange(c_pad) < C, 0.0, _NEG_BIG).astype(jnp.float32).reshape(1, c_pad)

    if matmul_dtype is not None:
        x_mm = x.astype(matmul_dtype)
        weight = weight.astype(matmul_dtype)
    else:
        x_mm = x

    labels2 = labels.reshape(N, 1).astype(jnp.int32)
    lam = jnp.full((1,), ith_iter / total_iter, dtype=jnp.float32)

    # Explicit VMEM budget (v7x has only 64 MiB physical; scoped defaults are lower still).
    x_bytes = 2 * N * E * jnp.dtype(x_mm.dtype).itemsize
    w_bytes = 2 * block_c * E * jnp.dtype(weight.dtype).itemsize
    tmp_bytes = 8 * N * block_c * 4                      # live f32 (N, block_c) temporaries
    small_bytes = 4 * 2 * block_c * 4 + 4 * N * 128 * 4  # inv_wn/bias tiles + lane-padded rows
    try:
        phys_vmem = pltpu.get_tpu_info().vmem_capacity_bytes
    except Exception:
        phys_vmem = 64 * 1024 * 1024
    vmem_limit = min(int(phys_vmem * 9 // 10),
                     max(32 * 1024 * 1024,
                         int(1.5 * (x_bytes + w_bytes + tmp_bytes + small_bytes))))

    kernel = functools.partial(awl_softmax_kernel, n_classes=C, has_padding=has_padding)

    out = pl.pallas_call(
        kernel,
        grid=(c_pad // block_c,),
        out_shape=jax.ShapeDtypeStruct((2,), jnp.float32),
        in_specs=[
            pl.BlockSpec((N, E), lambda c: (0, 0)),                    # x: VMEM-resident
            pl.BlockSpec((block_c, E), lambda c: (c, 0)),              # w: pipelined class tiles
            pl.BlockSpec((1, block_c), lambda c: (0, c)),              # 1/||w|| class tiles
            pl.BlockSpec(memory_space=pltpu.MemorySpace.VMEM),         # labels (N, 1)
            pl.BlockSpec(memory_space=pltpu.MemorySpace.VMEM),         # margin_scaler (N, 1)
            pl.BlockSpec(memory_space=pltpu.MemorySpace.VMEM),         # 1/||x|| (N, 1)
            pl.BlockSpec((1, block_c), lambda c: (0, c)),              # padded-class bias row
            pl.BlockSpec(memory_space=pltpu.MemorySpace.SMEM),         # lambda_run scalar
        ],
        out_specs=pl.BlockSpec(memory_space=pltpu.MemorySpace.SMEM),   # packed (loss, prec1)
        scratch_shapes=[
            pltpu.VMEM((N, 8), jnp.float32),   # merged accumulators: m_run, l_run, tgt, cos_sum
            pltpu.VMEM((N, 1), jnp.int32),     # running argmax index
        ],
        compiler_params=pltpu.CompilerParams(
            dimension_semantics=("arbitrary",),   # class axis carries the accumulators
            vmem_limit_bytes=vmem_limit,
        ),
    )(x_mm, weight, inv_wn, labels2, margin, inv_xn, bias, lam)
    return out[0], out[1], new_bm


def awl_softmax_ref(x, weight, labels, batch_mean, ith_iter, total_iter):
    """Pure-JAX reference mirroring the PyTorch forward."""
    x = x.astype(jnp.float32)
    w = weight.astype(jnp.float32)
    norms = jnp.linalg.norm(x, axis=1, keepdims=True)
    safe_norms = jnp.clip(norms, 0.001, 200.0)
    bm = jnp.mean(safe_norms) * T_ALPHA + (1 - T_ALPHA) * batch_mean
    margin_scaler = jnp.where(safe_norms > bm, 1.0, -1.0)
    output = x @ w.T
    w_norms = jnp.linalg.norm(w, axis=1, keepdims=True)
    cosine = output / (jnp.maximum(norms, 1e-12) * jnp.maximum(w_norms, 1e-12).T)
    cosine = jnp.clip(cosine, -1 + EPS, 1 - EPS)
    one_hot = jax.nn.one_hot(labels, w.shape[0], dtype=jnp.float32)
    out_mix = one_hot * output + (1 - one_hot) * cosine
    log_p = jax.nn.log_softmax(out_mix, axis=-1)
    log_pt = jnp.take_along_axis(log_p, labels[:, None], axis=1)
    ce_loss = -log_pt
    lam = ith_iter / total_iter
    weights = lam * (margin_scaler * (1 - cosine) + 2.0) + (1 - lam)
    loss = jnp.mean(weights * ce_loss)                                   # mean over N*C
    prec1 = 100.0 * jnp.mean((jnp.argmax(out_mix, axis=1) == labels).astype(jnp.float32))
    return loss, prec1, bm


if __name__ == "__main__":
    # batch=8, embedding=64, nClasses=200 — 2 class tiles of 128 (exercises the
    # multi-tile online-LSE path and the padded-class bias on the last tile).
    N, E, C = 8, 64, 200
    total_iter = 100
    ith_iter = 10

    key = jax.random.PRNGKey(0)
    kx, kw, kl = jax.random.split(key, 3)
    x = jax.random.normal(kx, (N, E), dtype=jnp.float32)
    weight = jax.random.normal(kw, (C, E), dtype=jnp.float32) * 0.1      # nn.Parameter(nClasses, emb)
    labels = jax.random.randint(kl, (N,), 0, C, dtype=jnp.int32)
    batch_mean0 = jnp.zeros((), dtype=jnp.float32)                       # register_buffer zeros(1)*20 == 0
    # TODO(synk): self.fc / self.criterion / self.ce from __init__ are unused in forward(); omitted.

    rl, rp, rb = awl_softmax_ref(x, weight, labels, batch_mean0, ith_iter, total_iter)

    # f32 MXU path, 2 class tiles + padding.
    loss, prec1, new_bm = awl_softmax_loss(x, weight, labels, batch_mean0, ith_iter,
                                           total_iter, block_c=128)
    jax.block_until_ready((loss, prec1, new_bm))
    assert jnp.allclose(loss, rl, rtol=1e-4, atol=1e-4), (loss, rl)
    assert jnp.allclose(prec1, rp, rtol=1e-4, atol=1e-4), (prec1, rp)
    assert jnp.allclose(new_bm, rb, rtol=1e-4, atol=1e-4), (new_bm, rb)

    # f32 MXU path, single 256-wide class tile (v6e/v7x-friendly default width).
    loss2, prec12, bm2 = awl_softmax_loss(x, weight, labels, batch_mean0, ith_iter,
                                          total_iter, block_c=256)
    jax.block_until_ready((loss2, prec12, bm2))
    assert jnp.allclose(loss2, rl, rtol=1e-4, atol=1e-4), (loss2, rl)
    assert jnp.allclose(prec12, rp, rtol=1e-4, atol=1e-4), (prec12, rp)

    # bf16 MXU operands (f32 accumulation) — looser tolerance for the bf16 rounding.
    loss3, prec13, bm3 = awl_softmax_loss(x, weight, labels, batch_mean0, ith_iter,
                                          total_iter, block_c=128,
                                          matmul_dtype=jnp.bfloat16)
    jax.block_until_ready((loss3, prec13, bm3))
    assert jnp.allclose(loss3, rl, rtol=3e-2, atol=3e-2), (loss3, rl)
    assert abs(float(prec13) - float(rp)) <= 100.0 / N + 1e-3, (prec13, rp)
    assert jnp.allclose(bm3, rb, rtol=1e-4, atol=1e-4), (bm3, rb)

    print("KERNEL_OK")
</pallas_src>

<mosaic_0001>
module attributes {stable_mosaic.version = 11 : i64} {
  func.func @awl_softmax_kernel(%arg0: i32, %arg1: memref<8x64xf32, #tpu.memory_space<vmem>>, %arg2: memref<128x64xf32, #tpu.memory_space<vmem>>, %arg3: memref<1x128xf32, #tpu.memory_space<vmem>>, %arg4: memref<8x1xi32, #tpu.memory_space<vmem>>, %arg5: memref<8x1xf32, #tpu.memory_space<vmem>>, %arg6: memref<8x1xf32, #tpu.memory_space<vmem>>, %arg7: memref<1x128xf32, #tpu.memory_space<vmem>>, %arg8: memref<1xf32, #tpu.memory_space<smem>>, %arg9: memref<2xf32, #tpu.memory_space<smem>>, %arg10: memref<8x8xf32, #tpu.memory_space<vmem>>, %arg11: memref<8x1xi32, #tpu.memory_space<vmem>>) attributes {dimension_semantics = [#tpu.dimension_semantics<arbitrary>], iteration_bounds = array<i64: 2>, scalar_prefetch = 0 : i64, scratch_operands = 2 : i64, tpu.core_type = #tpu.core_type<tc>, window_params = [{pipeline_mode = #tpu.pipeline_mode<synchronous>, transform_indices = @transform_0, window_bounds = array<i64: 8, 64>}, {transform_indices = @transform_1, window_bounds = array<i64: 128, 64>}, {transform_indices = @transform_2, window_bounds = array<i64: 1, 128>}, {pipeline_mode = #tpu.pipeline_mode<synchronous>, transform_indices = @transform_3, window_bounds = array<i64: 8, 1>}, {pipeline_mode = #tpu.pipeline_mode<synchronous>, transform_indices = @transform_4, window_bounds = array<i64: 8, 1>}, {pipeline_mode = #tpu.pipeline_mode<synchronous>, transform_indices = @transform_5, window_bounds = array<i64: 8, 1>}, {transform_indices = @transform_6, window_bounds = array<i64: 1, 128>}, {transform_indices = @transform_7, window_bounds = array<i64: 1>}, {transform_indices = @transform_8, window_bounds = array<i64: 2>}]} {
    %c0 = arith.constant 0 : index
    %c0_0 = arith.constant 0 : index
    %0 = vector.load %arg1[%c0, %c0_0] : memref<8x64xf32, #tpu.memory_space<vmem>>, vector<8x64xf32>
    %c0_1 = arith.constant 0 : index
    %c0_2 = arith.constant 0 : index
    %1 = vector.load %arg4[%c0_1, %c0_2] : memref<8x1xi32, #tpu.memory_space<vmem>>, vector<8x1xi32>
    %c0_i32 = arith.constant 0 : i32
    %2 = arith.cmpi eq, %arg0, %c0_i32 : i32
    %3 = arith.extui %2 : i1 to i32
    %c0_i32_3 = arith.constant 0 : i32
    %4 = arith.cmpi ne, %3, %c0_i32_3 : i32
    scf.if %4 {
      %68 = tpu.iota {dimensions = array<i32: 1>} : vector<8x8xi32>
      %c0_i32_38 = arith.constant 0 : i32
      %69 = vector.broadcast %c0_i32_38 : i32 to vector<8x8xi32>
      %70 = arith.cmpi eq, %68, %69 : vector<8x8xi32>
      %cst_39 = arith.constant -1.000000e+30 : f32
      %cst_40 = arith.constant 0.000000e+00 : f32
      %71 = vector.broadcast %cst_39 : f32 to vector<8x8xf32>
      %72 = vector.broadcast %cst_40 : f32 to vector<8x8xf32>
      %73 = arith.select %70, %71, %72 : vector<8x8xi1>, vector<8x8xf32>
      %c0_41 = arith.constant 0 : index
      %c0_42 = arith.constant 0 : index
      %74 = vector.load %arg10[%c0_41, %c0_42] : memref<8x8xf32, #tpu.memory_space<vmem>>, vector<8x8xf32>
      tpu.vector_store %arg10[%c0_41, %c0_42], %73 {strides = array<i32>} : memref<8x8xf32, #tpu.memory_space<vmem>>, vector<8x8xf32>,
      %c0_i32_43 = arith.constant 0 : i32
      %75 = vector.broadcast %c0_i32_43 : i32 to vector<8x1xi32>
      %c0_44 = arith.constant 0 : index
      %c0_45 = arith.constant 0 : index
      %76 = vector.load %arg11[%c0_44, %c0_45] : memref<8x1xi32, #tpu.memory_space<vmem>>, vector<8x1xi32>
      tpu.vector_store %arg11[%c0_44, %c0_45], %75 {strides = array<i32>} : memref<8x1xi32, #tpu.memory_space<vmem>>, vector<8x1xi32>,
    } else {
    }
    %c0_4 = arith.constant 0 : index
    %c0_5 = arith.constant 0 : index
    %5 = vector.load %arg2[%c0_4, %c0_5] : memref<128x64xf32, #tpu.memory_space<vmem>>, vector<128x64xf32>
    %cst = arith.constant dense<0.000000e+00> : vector<8x128xf32>
    %6 = tpu.matmul %0, %5, %cst {dimension_numbers = #tpu.dot_dimension_numbers<[1], [1], [0], [0], [0, 0, 1, 0], [], []>} : vector<8x64xf32>, vector<128x64xf32>, vector<8x128xf32> -> vector<8x128xf32>
    %c0_6 = arith.constant 0 : index
    %c0_7 = arith.constant 0 : index
    %7 = vector.load %arg6[%c0_6, %c0_7] : memref<8x1xf32, #tpu.memory_space<vmem>>, vector<8x1xf32>
    %8 = vector.broadcast %7 : vector<8x1xf32> to vector<8x128xf32>
    %9 = arith.mulf %6, %8 : vector<8x128xf32>
    %c0_8 = arith.constant 0 : index
    %c0_9 = arith.constant 0 : index
    %10 = vector.load %arg3[%c0_8, %c0_9] : memref<1x128xf32, #tpu.memory_space<vmem>>, vector<1x128xf32>
    %11 = vector.broadcast %10 : vector<1x128xf32> to vector<8x128xf32>
    %12 = arith.mulf %9, %11 : vector<8x128xf32>
    %cst_10 = arith.constant -9.990000e-01 : f32
    %cst_11 = arith.constant 9.990000e-01 : f32
    %13 = vector.broadcast %cst_10 : f32 to vector<8x128xf32>
    %14 = arith.maximumf %13, %12 : vector<8x128xf32>
    %15 = vector.broadcast %cst_11 : f32 to vector<8x128xf32>
    %16 = arith.minimumf %15, %14 : vector<8x128xf32>
    %c128_i32 = arith.constant 128 : i32
    %17 = arith.muli %arg0, %c128_i32 : i32
    %18 = tpu.iota {dimensions = array<i32: 1>} : vector<8x128xi32>
    %19 = vector.broadcast %17 : i32 to vector<8x128xi32>
    %20 = arith.addi %19, %18 : vector<8x128xi32>
    %21 = vector.broadcast %1 : vector<8x1xi32> to vector<8x128xi32>
    %22 = arith.cmpi eq, %20, %21 : vector<8x128xi32>
    %23 = arith.select %22, %6, %16 : vector<8x128xi1>, vector<8x128xf32>
    %c0_12 = arith.constant 0 : index
    %c0_13 = arith.constant 0 : index
    %24 = vector.load %arg7[%c0_12, %c0_13] : memref<1x128xf32, #tpu.memory_space<vmem>>, vector<1x128xf32>
    %25 = vector.broadcast %24 : vector<1x128xf32> to vector<8x128xf32>
    %26 = arith.addf %23, %25 : vector<8x128xf32>
    %cst_14 = arith.constant dense<0xFF800000> : vector<8xf32>
    %27 = vector.multi_reduction <maximumf>, %26, %cst_14 [1] : vector<8x128xf32> to vector<8xf32>
    %28 = vector.shape_cast %27 : vector<8xf32> to vector<8x1xf32>
    %c0_15 = arith.constant 0 : index
    %c0_16 = arith.constant 0 : index
    %29 = vector.load %arg10[%c0_15, %c0_16] : memref<8x8xf32, #tpu.memory_space<vmem>>, vector<8x1xf32>
    %30 = arith.maximumf %29, %28 : vector<8x1xf32>
    %c0_17 = arith.constant 0 : index
    %c1 = arith.constant 1 : index
    %31 = vector.load %arg10[%c0_17, %c1] : memref<8x8xf32, #tpu.memory_space<vmem>>, vector<8x1xf32>
    %32 = arith.subf %29, %30 : vector<8x1xf32>
    %33 = math.exp %32 : vector<8x1xf32>
    %34 = arith.mulf %31, %33 : vector<8x1xf32>
    %35 = vector.broadcast %30 : vector<8x1xf32> to vector<8x128xf32>
    %36 = arith.subf %26, %35 : vector<8x128xf32>
    %37 = math.exp %36 : vector<8x128xf32>
    %cst_18 = arith.constant dense<0.000000e+00> : vector<8xf32>
    %38 = vector.multi_reduction <add>, %37, %cst_18 [1] : vector<8x128xf32> to vector<8xf32>
    %39 = vector.shape_cast %38 : vector<8xf32> to vector<8x1xf32>
    %40 = arith.addf %34, %39 : vector<8x1xf32>
    %c0_19 = arith.constant 0 : index
    %c2 = arith.constant 2 : index
    %41 = vector.load %arg10[%c0_19, %c2] : memref<8x8xf32, #tpu.memory_space<vmem>>, vector<8x1xf32>
    %cst_20 = arith.constant 0.000000e+00 : f32
    %42 = vector.broadcast %cst_20 : f32 to vector<8x128xf32>
    %43 = arith.select %22, %6, %42 : vector<8x128xi1>, vector<8x128xf32>
    %cst_21 = arith.constant dense<0.000000e+00> : vector<8xf32>
    %44 = vector.multi_reduction <add>, %43, %cst_21 [1] : vector<8x128xf32> to vector<8xf32>
    %45 = vector.shape_cast %44 : vector<8xf32> to vector<8x1xf32>
    %46 = arith.addf %41, %45 : vector<8x1xf32>
    %c0_22 = arith.constant 0 : index
    %c3 = arith.constant 3 : index
    %47 = vector.load %arg10[%c0_22, %c3] : memref<8x8xf32, #tpu.memory_space<vmem>>, vector<8x1xf32>
    %cst_23 = arith.constant dense<0.000000e+00> : vector<8xf32>
    %48 = vector.multi_reduction <add>, %16, %cst_23 [1] : vector<8x128xf32> to vector<8xf32>
    %49 = vector.shape_cast %48 : vector<8xf32> to vector<8x1xf32>
    %50 = arith.addf %47, %49 : vector<8x1xf32>
    %51 = vector.broadcast %28 : vector<8x1xf32> to vector<8x128xf32>
    %52 = arith.cmpf oeq, %26, %51 : vector<8x128xf32>
    %c2147483647_i32 = arith.constant 2147483647 : i32
    %53 = vector.broadcast %c2147483647_i32 : i32 to vector<8x128xi32>
    %54 = arith.select %52, %20, %53 : vector<8x128xi1>, vector<8x128xi32>
    %cst_24 = arith.constant dense<2147483647> : vector<8xi32>
    %55 = vector.multi_reduction <minsi>, %54, %cst_24 [1] : vector<8x128xi32> to vector<8xi32>
    %56 = vector.shape_cast %55 : vector<8xi32> to vector<8x1xi32>
    %57 = arith.cmpf ogt, %28, %29 : vector<8x1xf32>
    %c0_25 = arith.constant 0 : index
    %c0_26 = arith.constant 0 : index
    %58 = vector.load %arg11[%c0_25, %c0_26] : memref<8x1xi32, #tpu.memory_space<vmem>>, vector<8x1xi32>
    %59 = arith.select %57, %56, %58 : vector<8x1xi1>, vector<8x1xi32>
    %c0_27 = arith.constant 0 : index
    %c0_28 = arith.constant 0 : index
    %60 = vector.load %arg10[%c0_27, %c0_28] : memref<8x8xf32, #tpu.memory_space<vmem>>, vector<8x1xf32>
    tpu.vector_store %arg10[%c0_27, %c0_28], %30 {strides = array<i32>} : memref<8x8xf32, #tpu.memory_space<vmem>>, vector<8x1xf32>,
    %c0_29 = arith.constant 0 : index
    %c1_30 = arith.constant 1 : index
    %61 = vector.load %arg10[%c0_29, %c1_30] : memref<8x8xf32, #tpu.memory_space<vmem>>, vector<8x1xf32>
    tpu.vector_store %arg10[%c0_29, %c1_30], %40 {strides = array<i32>} : memref<8x8xf32, #tpu.memory_space<vmem>>, vector<8x1xf32>,
    %c0_31 = arith.constant 0 : index
    %c2_32 = arith.constant 2 : index
    %62 = vector.load %arg10[%c0_31, %c2_32] : memref<8x8xf32, #tpu.memory_space<vmem>>, vector<8x1xf32>
    tpu.vector_store %arg10[%c0_31, %c2_32], %46 {strides = array<i32>} : memref<8x8xf32, #tpu.memory_space<vmem>>, vector<8x1xf32>,
    %c0_33 = arith.constant 0 : index
    %c3_34 = arith.constant 3 : index
    %63 = vector.load %arg10[%c0_33, %c3_34] : memref<8x8xf32, #tpu.memory_space<vmem>>, vector<8x1xf32>
    tpu.vector_store %arg10[%c0_33, %c3_34], %50 {strides = array<i32>} : memref<8x8xf32, #tpu.memory_space<vmem>>, vector<8x1xf32>,
    %c0_35 = arith.constant 0 : index
    %c0_36 = arith.constant 0 : index
    %64 = vector.load %arg11[%c0_35, %c0_36] : memref<8x1xi32, #tpu.memory_space<vmem>>, vector<8x1xi32>
    tpu.vector_store %arg11[%c0_35, %c0_36], %59 {strides = array<i32>} : memref<8x1xi32, #tpu.memory_space<vmem>>, vector<8x1xi32>,
    %c1_i32 = arith.constant 1 : i32
    %65 = arith.cmpi eq, %arg0, %c1_i32 : i32
    %66 = arith.extui %65 : i1 to i32
    %c0_i32_37 = arith.constant 0 : i32
    %67 = arith.cmpi ne, %66, %c0_i32_37 : i32
    scf.if %67 {
      %c0_38 = arith.constant 0 : index
      %68 = memref.load %arg8[%c0_38] : memref<1xf32, #tpu.memory_space<smem>>
      %69 = math.log %40 : vector<8x1xf32>
      %70 = arith.addf %30, %69 : vector<8x1xf32>
      %71 = arith.subf %70, %46 : vector<8x1xf32>
      %c0_39 = arith.constant 0 : index
      %c0_40 = arith.constant 0 : index
      %72 = vector.load %arg5[%c0_39, %c0_40] : memref<8x1xf32, #tpu.memory_space<vmem>>, vector<8x1xf32>
      %73 = vector.broadcast %68 : f32 to vector<8x1xf32>
      %74 = arith.mulf %73, %72 : vector<8x1xf32>
      %cst_41 = arith.constant 2.000000e+02 : f32
      %75 = vector.broadcast %cst_41 : f32 to vector<8x1xf32>
      %76 = arith.subf %75, %50 : vector<8x1xf32>
      %77 = arith.mulf %74, %76 : vector<8x1xf32>
      %cst_42 = arith.constant 1.000000e+00 : f32
      %78 = arith.addf %68, %cst_42 : f32
      %cst_43 = arith.constant 2.000000e+02 : f32
      %79 = arith.mulf %cst_43, %78 : f32
      %80 = vector.broadcast %79 : f32 to vector<8x1xf32>
      %81 = arith.addf %77, %80 : vector<8x1xf32>
      %82 = arith.mulf %71, %81 : vector<8x1xf32>
      %83 = vector.shape_cast %82 : vector<8x1xf32> to vector<1x8x1xf32>
      %cst_44 = arith.constant dense<0.000000e+00> : vector<1xf32>
      %84 = vector.multi_reduction <add>, %83, %cst_44 [1, 2] : vector<1x8x1xf32> to vector<1xf32>
      %85 = vector.shape_cast %84 : vector<1xf32> to vector<1x1x1xf32>
      %86 = vector.extract %85[0, 0, 0] : f32 from vector<1x1x1xf32>
      %cst_45 = arith.constant 8.000000e+00 : f32
      %cst_46 = arith.constant 2.000000e+02 : f32
      %87 = arith.mulf %cst_45, %cst_46 : f32
      %88 = arith.divf %86, %87 : f32
      %c0_47 = arith.constant 0 : index
      %89 = memref.load %arg9[%c0_47] : memref<2xf32, #tpu.memory_space<smem>>
      memref.store %88, %arg9[%c0_47] : memref<2xf32, #tpu.memory_space<smem>>
      %90 = arith.cmpi eq, %59, %1 : vector<8x1xi32>
      %91 = arith.extui %90 : vector<8x1xi1> to vector<8x1xi32>
      %92 = arith.sitofp %91 : vector<8x1xi32> to vector<8x1xf32>
      %93 = vector.shape_cast %92 : vector<8x1xf32> to vector<1x8x1xf32>
      %cst_48 = arith.constant dense<0.000000e+00> : vector<1xf32>
      %94 = vector.multi_reduction <add>, %93, %cst_48 [1, 2] : vector<1x8x1xf32> to vector<1xf32>
      %95 = vector.shape_cast %94 : vector<1xf32> to vector<1x1x1xf32>
      %96 = vector.extract %95[0, 0, 0] : f32 from vector<1x1x1xf32>
      %cst_49 = arith.constant 1.000000e+02 : f32
      %97 = arith.mulf %cst_49, %96 : f32
      %cst_50 = arith.constant 8.000000e+00 : f32
      %98 = arith.divf %97, %cst_50 : f32
      %c1_51 = arith.constant 1 : index
      %99 = memref.load %arg9[%c1_51] : memref<2xf32, #tpu.memory_space<smem>>
      memref.store %98, %arg9[%c1_51] : memref<2xf32, #tpu.memory_space<smem>>
    } else {
    }
    return
  }
  func.func @transform_0(%arg0: i32) -> (i32, i32) {
    %c0_i32 = arith.constant 0 : i32
    %c0_i32_0 = arith.constant 0 : i32
    %c0_i32_1 = arith.constant 0 : i32
    return %c0_i32, %c0_i32_0 : i32, i32
  }
  func.func @transform_1(%arg0: i32) -> (i32, i32) {
    %c0_i32 = arith.constant 0 : i32
    %c0_i32_0 = arith.constant 0 : i32
    return %arg0, %c0_i32 : i32, i32
  }
  func.func @transform_2(%arg0: i32) -> (i32, i32) {
    %c0_i32 = arith.constant 0 : i32
    %c0_i32_0 = arith.constant 0 : i32
    return %c0_i32, %arg0 : i32, i32
  }
  func.func @transform_3(%arg0: i32) -> (i32, i32) {
    %c0_i32 = arith.constant 0 : i32
    %c0_i32_0 = arith.constant 0 : i32
    %c0_i32_1 = arith.constant 0 : i32
    return %c0_i32, %c0_i32_0 : i32, i32
  }
  func.func @transform_4(%arg0: i32) -> (i32, i32) {
    %c0_i32 = arith.constant 0 : i32
    %c0_i32_0 = arith.constant 0 : i32
    %c0_i32_1 = arith.constant 0 : i32
    return %c0_i32, %c0_i32_0 : i32, i32
  }
  func.func @transform_5(%arg0: i32) -> (i32, i32) {
    %c0_i32 = arith.constant 0 : i32
    %c0_i32_0 = arith.constant 0 : i32
    %c0_i32_1 = arith.constant 0 : i32
    return %c0_i32, %c0_i32_0 : i32, i32
  }
  func.func @transform_6(%arg0: i32) -> (i32, i32) {
    %c0_i32 = arith.constant 0 : i32
    %c0_i32_0 = arith.constant 0 : i32
    return %c0_i32, %arg0 : i32, i32
  }
  func.func @transform_7(%arg0: i32) -> i32 {
    %c0_i32 = arith.constant 0 : i32
    %c0_i32_0 = arith.constant 0 : i32
    return %c0_i32 : i32
  }
  func.func @transform_8(%arg0: i32) -> i32 {
    %c0_i32 = arith.constant 0 : i32
    %c0_i32_0 = arith.constant 0 : i32
    return %c0_i32 : i32
  }
}

</mosaic_0001>

<llo_original>
// kernel: tpu_custom_call.1
$region0: #{tpu_custom_call.1}
  #allocation0 [shape = 'u32[]', space=smem, size = 0x4, offset = 0x4, fixed_abs, tag = 'smem constant byte address 0x4 - core index']
  #allocation1 [shape = 'u32[144,128]{1,0:T(1,128)}', space=vmem, size = 0x12000, scoped, tag = 'internal scratch']
  #allocation2 [shape = 'f32[8,8]{1,0:T(8,128)}', space=vmem, size = 0x1000, scoped, tag = 'scratch operand']
  #allocation3 [shape = 's32[8,1]{1,0:T(8,128)}', space=vmem, size = 0x1000, scoped, tag = 'scratch operand']
  #allocation4 [shape = 'f32[1]{0:T(128)S(6)}', space=smem, size = 0x200, scoped, tag = 'scoped memory for tpu_custom_call.1']
  %s0 = inlined_call_operand.vmem [shape: f32[8,64], index: 0, kind: input, shape index: {}]
  %s1 = inlined_call_operand.vmem [shape: f32[256,64], index: 1, kind: input, shape index: {}]
  %s2 = inlined_call_operand.vmem [shape: f32[1,256], index: 2, kind: input, shape index: {}]
  %s3 = inlined_call_operand.vmem [shape: s32[8,1], index: 3, kind: input, shape index: {}]
  %s4 = inlined_call_operand.vmem [shape: f32[8,1], index: 4, kind: input, shape index: {}]
  %s5 = inlined_call_operand.vmem [shape: f32[8,1], index: 5, kind: input, shape index: {}]
  %s6 = inlined_call_operand.vmem [shape: f32[1,256], index: 6, kind: input, shape index: {}]
  %s7 = inlined_call_operand.<no memory space> [shape: f32[1], index: 7, kind: input, shape index: {}]
  %s8 = inlined_call_operand.hbm [shape: f32[2], index: 8, kind: output, shape index: {}]
  %s9 = sld [smem:[#allocation0]]
  $region73: #{tpu_custom_call.1} parent=0
    _
  %s11 = ssub.s32 1, %s9
  %s12 = scalar_select 0, %s11, %s9
  %13 = sst [smem:[#allocation4]] %s7
  $region1: #{tpu_custom_call.1} parent=0
    #allocation5 [shape = 'u8[512]{0}', space=smem, size = 0x200, scoped, tag = 'output window, operand 0, single buffered']
    #allocation6 [shape = 's32[2]{0}', space=sflag, size = 0x8, scoped, tag = 'scoped memory for tpu_custom_call.1']
    %14 = vsyncpa [#allocation6], 0
    loop: start=0, step=1, limit=4
    $region2: #{tpu_custom_call.1} parent=1 // loop_pre_header
      _
    $region3: #{tpu_custom_call.1} parent=1 // loop_header
      %s16 = sphi 0, %s20
      %p17 = scmp.ge.s32.totalorder %s16, 4
      %s24 = sphi 0, %s24
      %s26 = sphi 0, %s24
      %s27 = sphi 0, %s26
      %s41 = sphi 0, %s27
      %s47 = sphi 0, %s49
      %s50 = sphi 0, %s47
      %s51 = sphi 0, %s50
      %s67 = sphi 0, %s51
      %s73 = sphi 0, %s75
      %s76 = sphi 0, %s73
      %s77 = sphi 0, %s76
      %s93 = sphi 0, %s77
      %s97 = sphi 0, %s97
      %s99 = sphi 0, %s97
      %s100 = sphi 0, %s99
      %s114 = sphi 0, %s100
      %s118 = sphi 0, %s118
      %s120 = sphi 0, %s118
      %s121 = sphi 0, %s120
      %s135 = sphi 0, %s121
      %s139 = sphi 0, %s139
      %s141 = sphi 0, %s139
      %s142 = sphi 0, %s141
      %s156 = sphi 0, %s142
      %s162 = sphi 0, %s164
      %s165 = sphi 0, %s162
      %s166 = sphi 0, %s165
      %s182 = sphi 0, %s166
      %s186 = sphi 0, %s186
      %s188 = sphi 0, %s186
      %s189 = sphi 0, %s188
      %s203 = sphi 0, %s189
      %s207 = sphi 0, %s207
      %s209 = sphi 0, %s207
      %s210 = sphi 0, %s209
      %s224 = sphi 0, %s210
    $region4: #{tpu_custom_call.1} parent=1 // loop_header_branch
      %19 = sbr.rel (%p17) target = $region8
    $region5: #{tpu_custom_call.1} parent=1 // loop_body
      %s21 = ssub.s32 %s16, 1
      %s22 = ssub.s32 %s16, 2
      %s23 = sadd.s32 %s16, 1
      %s25 = sadd.s32 %s24, 1
      %p28 = scmp.eq.s32.totalorder %s16, 1
      %p29 = scmp.ne.s32.totalorder %s24, %s26
      %p30 = scmp.eq.s32.totalorder %s16, 0
      %p31 = por %p29, %p30
      %p32 = scmp.ne.s32.totalorder %s24, %s26
      %p33 = scmp.eq.s32.totalorder %s21, 1
      %p34 = por %p32, %p33
      %p35 = scmp.ne.s32.totalorder %s26, %s27
      %p36 = scmp.eq.s32.totalorder %s21, 0
      %p37 = por %p35, %p36
      %p38 = scmp.ne.s32.totalorder %s26, %s27
      %p39 = scmp.eq.s32.totalorder %s22, 1
      %p40 = por %p38, %p39
      %p42 = scmp.ne.s32.totalorder %s27, %s41
      %p43 = scmp.eq.s32.totalorder %s22, 0
      %p44 = por %p42, %p43
      %s45 = ssub.s32 %s16, %s23
      %p46 = scmp.eq.s32.totalorder %s45, 0
      %s48 = sadd.s32 %s47, 1
      %s49 = scalar_select %p46, %s47, %s48
      %p52 = pneg %p46
      %p53 = scmp.eq.s32.totalorder %s16, 1
      %p54 = por %p52, %p53
      %p55 = scmp.ne.s32.totalorder %s47, %s50
      %p56 = scmp.eq.s32.totalorder %s16, 0
      %p57 = por %p55, %p56
      %p58 = scmp.ne.s32.totalorder %s47, %s50
      %p59 = scmp.eq.s32.totalorder %s21, 1
      %p60 = por %p58, %p59
      %p61 = scmp.ne.s32.totalorder %s50, %s51
      %p62 = scmp.eq.s32.totalorder %s21, 0
      %p63 = por %p61, %p62
      %p64 = scmp.ne.s32.totalorder %s50, %s51
      %p65 = scmp.eq.s32.totalorder %s22, 1
      %p66 = por %p64, %p65
      %p68 = scmp.ne.s32.totalorder %s51, %s67
      %p69 = scmp.eq.s32.totalorder %s22, 0
      %p70 = por %p68, %p69
      %s71 = ssub.s32 %s16, %s23
      %p72 = scmp.eq.s32.totalorder %s71, 0
      %s74 = sadd.s32 %s73, 1
      %s75 = scalar_select %p72, %s73, %s74
      %p78 = pneg %p72
      %p79 = scmp.eq.s32.totalorder %s16, 1
      %p80 = por %p78, %p79
      %p81 = scmp.ne.s32.totalorder %s73, %s76
      %p82 = scmp.eq.s32.totalorder %s16, 0
      %p83 = por %p81, %p82
      %p84 = scmp.ne.s32.totalorder %s73, %s76
      %p85 = scmp.eq.s32.totalorder %s21, 1
      %p86 = por %p84, %p85
      %p87 = scmp.ne.s32.totalorder %s76, %s77
      %p88 = scmp.eq.s32.totalorder %s21, 0
      %p89 = por %p87, %p88
      %p90 = scmp.ne.s32.totalorder %s76, %s77
      %p91 = scmp.eq.s32.totalorder %s22, 1
      %p92 = por %p90, %p91
      %p94 = scmp.ne.s32.totalorder %s77, %s93
      %p95 = scmp.eq.s32.totalorder %s22, 0
      %p96 = por %p94, %p95
      %s98 = sadd.s32 %s97, 1
      %p101 = scmp.eq.s32.totalorder %s16, 1
      %p102 = scmp.ne.s32.totalorder %s97, %s99
      %p103 = scmp.eq.s32.totalorder %s16, 0
      %p104 = por %p102, %p103
      %p105 = scmp.ne.s32.totalorder %s97, %s99
      %p106 = scmp.eq.s32.totalorder %s21, 1
      %p107 = por %p105, %p106
      %p108 = scmp.ne.s32.totalorder %s99, %s100
      %p109 = scmp.eq.s32.totalorder %s21, 0
      %p110 = por %p108, %p109
      %p111 = scmp.ne.s32.totalorder %s99, %s100
      %p112 = scmp.eq.s32.totalorder %s22, 1
      %p113 = por %p111, %p112
      %p115 = scmp.ne.s32.totalorder %s100, %s114
      %p116 = scmp.eq.s32.totalorder %s22, 0
      %p117 = por %p115, %p116
      %s119 = sadd.s32 %s118, 1
      %p122 = scmp.eq.s32.totalorder %s16, 1
      %p123 = scmp.ne.s32.totalorder %s118, %s120
      %p124 = scmp.eq.s32.totalorder %s16, 0
      %p125 = por %p123, %p124
      %p126 = scmp.ne.s32.totalorder %s118, %s120
      %p127 = scmp.eq.s32.totalorder %s21, 1
      %p128 = por %p126, %p127
      %p129 = scmp.ne.s32.totalorder %s120, %s121
      %p130 = scmp.eq.s32.totalorder %s21, 0
      %p131 = por %p129, %p130
      %p132 = scmp.ne.s32.totalorder %s120, %s121
      %p133 = scmp.eq.s32.totalorder %s22, 1
      %p134 = por %p132, %p133
      %p136 = scmp.ne.s32.totalorder %s121, %s135
      %p137 = scmp.eq.s32.totalorder %s22, 0
      %p138 = por %p136, %p137
      %s140 = sadd.s32 %s139, 1
      %p143 = scmp.eq.s32.totalorder %s16, 1
      %p144 = scmp.ne.s32.totalorder %s139, %s141
      %p145 = scmp.eq.s32.totalorder %s16, 0
      %p146 = por %p144, %p145
      %p147 = scmp.ne.s32.totalorder %s139, %s141
      %p148 = scmp.eq.s32.totalorder %s21, 1
      %p149 = por %p147, %p148
      %p150 = scmp.ne.s32.totalorder %s141, %s142
      %p151 = scmp.eq.s32.totalorder %s21, 0
      %p152 = por %p150, %p151
      %p153 = scmp.ne.s32.totalorder %s141, %s142
      %p154 = scmp.eq.s32.totalorder %s22, 1
      %p155 = por %p153, %p154
      %p157 = scmp.ne.s32.totalorder %s142, %s156
      %p158 = scmp.eq.s32.totalorder %s22, 0
      %p159 = por %p157, %p158
      %s160 = ssub.s32 %s16, %s23
      %p161 = scmp.eq.s32.totalorder %s160, 0
      %s163 = sadd.s32 %s162, 1
      %s164 = scalar_select %p161, %s162, %s163
      %p167 = pneg %p161
      %p168 = scmp.eq.s32.totalorder %s16, 1
      %p169 = por %p167, %p168
      %p170 = scmp.ne.s32.totalorder %s162, %s165
      %p171 = scmp.eq.s32.totalorder %s16, 0
      %p172 = por %p170, %p171
      %p173 = scmp.ne.s32.totalorder %s162, %s165
      %p174 = scmp.eq.s32.totalorder %s21, 1
      %p175 = por %p173, %p174
      %p176 = scmp.ne.s32.totalorder %s165, %s166
      %p177 = scmp.eq.s32.totalorder %s21, 0
      %p178 = por %p176, %p177
      %p179 = scmp.ne.s32.totalorder %s165, %s166
      %p180 = scmp.eq.s32.totalorder %s22, 1
      %p181 = por %p179, %p180
      %p183 = scmp.ne.s32.totalorder %s166, %s182
      %p184 = scmp.eq.s32.totalorder %s22, 0
      %p185 = por %p183, %p184
      %s187 = sadd.s32 %s186, 1
      %p190 = scmp.eq.s32.totalorder %s16, 1
      %p191 = scmp.ne.s32.totalorder %s186, %s188
      %p192 = scmp.eq.s32.totalorder %s16, 0
      %p193 = por %p191, %p192
      %p194 = scmp.ne.s32.totalorder %s186, %s188
      %p195 = scmp.eq.s32.totalorder %s21, 1
      %p196 = por %p194, %p195
      %p197 = scmp.ne.s32.totalorder %s188, %s189
      %p198 = scmp.eq.s32.totalorder %s21, 0
      %p199 = por %p197, %p198
      %p200 = scmp.ne.s32.totalorder %s188, %s189
      %p201 = scmp.eq.s32.totalorder %s22, 1
      %p202 = por %p200, %p201
      %p204 = scmp.ne.s32.totalorder %s189, %s203
      %p205 = scmp.eq.s32.totalorder %s22, 0
      %p206 = por %p204, %p205
      %s208 = sadd.s32 %s207, 1
      %p211 = scmp.eq.s32.totalorder %s16, 1
      %p212 = scmp.ne.s32.totalorder %s207, %s209
      %p213 = scmp.eq.s32.totalorder %s16, 0
      %p214 = por %p212, %p213
      %p215 = scmp.ne.s32.totalorder %s207, %s209
      %p216 = scmp.eq.s32.totalorder %s21, 1
      %p217 = por %p215, %p216
      %p218 = scmp.ne.s32.totalorder %s209, %s210
      %p219 = scmp.eq.s32.totalorder %s21, 0
      %p220 = por %p218, %p219
      %p221 = scmp.ne.s32.totalorder %s209, %s210
      %p222 = scmp.eq.s32.totalorder %s22, 1
      %p223 = por %p221, %p222
      %p225 = scmp.ne.s32.totalorder %s210, %s224
      %p226 = scmp.eq.s32.totalorder %s22, 0
      %p227 = por %p225, %p226
      %p228 = scmp.le.s32.totalorder 1, %s16
      %p229 = scmp.lt.s32.totalorder %s16, 3
      %p230 = pnand %p228, %p229
      %p231 = pneg %p230
      // Predicated region
      $region9: #{tpu_custom_call.1} parent=5 // pred_check
        _
      $region10: #{tpu_custom_call.1} parent=5 // pred_check_branch
        %233 = sbr.rel (%p230) target = $region12
      $region11: #{tpu_custom_call.1} parent=5 // pred_region
        %s234 = ssub.s32 %s16, 1
        // Predicated region
        $region13: #{tpu_custom_call.1} parent=11 // pred_check
          %p235 = pneg %p37
        $region14: #{tpu_custom_call.1} parent=11 // pred_check_branch
          %237 = sbr.rel (%p235) target = $region16
        $region15: #{tpu_custom_call.1} parent=11 // pred_region
          _
        $region16: #{tpu_custom_call.1} parent=11 // pred_fallthru
          _
        // Predicated region
        $region17: #{tpu_custom_call.1} parent=11 // pred_check
          %p238 = pneg %p110
        $region18: #{tpu_custom_call.1} parent=11 // pred_check_branch
          %240 = sbr.rel (%p238) target = $region20
        $region19: #{tpu_custom_call.1} parent=11 // pred_region
          _
        $region20: #{tpu_custom_call.1} parent=11 // pred_fallthru
          _
        // Predicated region
        $region21: #{tpu_custom_call.1} parent=11 // pred_check
          %p241 = pneg %p131
        $region22: #{tpu_custom_call.1} parent=11 // pred_check_branch
          %243 = sbr.rel (%p241) target = $region24
        $region23: #{tpu_custom_call.1} parent=11 // pred_region
          _
        $region24: #{tpu_custom_call.1} parent=11 // pred_fallthru
          _
        // Predicated region
        $region25: #{tpu_custom_call.1} parent=11 // pred_check
          %p244 = pneg %p152
        $region26: #{tpu_custom_call.1} parent=11 // pred_check_branch
          %246 = sbr.rel (%p244) target = $region28
        $region27: #{tpu_custom_call.1} parent=11 // pred_region
          _
        $region28: #{tpu_custom_call.1} parent=11 // pred_fallthru
          _
        // Predicated region
        $region29: #{tpu_custom_call.1} parent=11 // pred_check
          %p247 = pneg %p199
        $region30: #{tpu_custom_call.1} parent=11 // pred_check_branch
          %249 = sbr.rel (%p247) target = $region32
        $region31: #{tpu_custom_call.1} parent=11 // pred_region
          _
        $region32: #{tpu_custom_call.1} parent=11 // pred_fallthru
          _
      $region12: #{tpu_custom_call.1} parent=5 // pred_fallthru
        _
      %p250 = scmp.lt.s32.totalorder %s16, 2
      // Predicated region
      $region33: #{tpu_custom_call.1} parent=5 // pred_check
        %p251 = pneg %p250
      $region34: #{tpu_custom_call.1} parent=5 // pred_check_branch
        %253 = sbr.rel (%p251) target = $region36
      $region35: #{tpu_custom_call.1} parent=5 // pred_region
        // Predicated region
        $region37: #{tpu_custom_call.1} parent=35 // pred_check
          %p254 = pneg %p57
        $region38: #{tpu_custom_call.1} parent=35 // pred_check_branch
          %256 = sbr.rel (%p254) target = $region40
        $region39: #{tpu_custom_call.1} parent=35 // pred_region
          %s257 = smul.u32 16, %s16
          %p258 = scmp.lt.s32.totalorder %s257, 31
          %s259 = scalar_select %p258, %s257, 31
          %s260 = smul.addr %s259, 8
          %s261 = scalar_lea.vmem %s1, %s260
          %s262 = smul.u32 16, %s16
        $region40: #{tpu_custom_call.1} parent=35 // pred_fallthru
          _
        // Predicated region
        $region41: #{tpu_custom_call.1} parent=35 // pred_check
          %p263 = pneg %p83
        $region42: #{tpu_custom_call.1} parent=35 // pred_check_branch
          %265 = sbr.rel (%p263) target = $region44
        $region43: #{tpu_custom_call.1} parent=35 // pred_region
          %p266 = scmp.lt.s32.totalorder %s16, 1
          %s267 = scalar_select %p266, %s16, 1
          %s268 = scalar_lea.vmem %s2, %s267
        $region44: #{tpu_custom_call.1} parent=35 // pred_fallthru
          _
        // Predicated region
        $region45: #{tpu_custom_call.1} parent=35 // pred_check
          %p269 = pneg %p172
        $region46: #{tpu_custom_call.1} parent=35 // pred_check_branch
          %271 = sbr.rel (%p269) target = $region48
        $region47: #{tpu_custom_call.1} parent=35 // pred_region
          %p272 = scmp.lt.s32.totalorder %s16, 1
          %s273 = scalar_select %p272, %s16, 1
          %s274 = scalar_lea.vmem %s6, %s273
        $region48: #{tpu_custom_call.1} parent=35 // pred_fallthru
          _
      $region36: #{tpu_custom_call.1} parent=5 // pred_fallthru
        _
      %p275 = scmp.le.s32.totalorder 1, %s16
      %p276 = scmp.lt.s32.totalorder %s16, 3
      %p277 = pnand %p275, %p276
      %p278 = pneg %p277
      // Predicated region
      $region49: #{tpu_custom_call.1} parent=5 // pred_check
        _
      $region50: #{tpu_custom_call.1} parent=5 // pred_check_branch
        %280 = sbr.rel (%p277) target = $region52
      $region51: #{tpu_custom_call.1} parent=5 // pred_region
        %s281 = ssub.s32 %s16, 1
        %p282 = pneg %p37
        %p283 = pneg %p34
        %s284 = smul.u32 16, %s21
        %p285 = scmp.lt.s32.totalorder %s284, 31
        %s286 = scalar_select %p285, %s284, 31
        %s287 = smul.addr %s286, 8
        %s288 = scalar_lea.vmem %s1, %s287
        %p289 = pneg %p63
        %p290 = pneg %p60
        %p291 = scmp.lt.s32.totalorder %s21, 1
        %s292 = scalar_select %p291, %s21, 1
        %s293 = scalar_lea.vmem %s2, %s292
        %p294 = pneg %p89
        %p295 = pneg %p86
        %p296 = pneg %p110
        %p297 = pneg %p107
        %p298 = pneg %p131
        %p299 = pneg %p128
        %p300 = pneg %p152
        %p301 = pneg %p149
        %p302 = scmp.lt.s32.totalorder %s21, 1
        %s303 = scalar_select %p302, %s21, 1
        %s304 = scalar_lea.vmem %s6, %s303
        %p305 = pneg %p178
        %p306 = pneg %p175
        %p307 = pneg %p199
        %p308 = pneg %p196
        %p309 = pneg %p220
        %p310 = pneg %p217
        %s311 = smul.u32 16, %s21
        %p312 = scmp.lt.s32.totalorder %s311, 31
        %s313 = scalar_select %p312, %s311, 31
        %s314 = smul.addr %s313, 8
        %s315 = scalar_lea.vmem %s1, %s314
        %s316 = smul.u32 16, %s21
        %p317 = scmp.lt.s32.totalorder %s21, 1
        %s318 = scalar_select %p317, %s21, 1
        %s319 = scalar_lea.vmem %s2, %s318
        %p320 = scmp.lt.s32.totalorder %s21, 1
        %s321 = scalar_select %p320, %s21, 1
        %s322 = scalar_lea.vmem %s6, %s321
        %v323 = vld [vmem:[%s0] sm:$0xff]
        %v324 = vld [vmem:[%s3] sm:$0xff]
        %p325 = scmp.eq.s32.totalorder %s21, 0
        // Predicated region
        $region53: #{tpu_custom_call.1} parent=51 // pred_check
          %p326 = pneg %p325
        $region54: #{tpu_custom_call.1} parent=51 // pred_check_branch
          %328 = sbr.rel (%p326) target = $region56
        $region55: #{tpu_custom_call.1} parent=51 // pred_region
          %v329 = vlaneseq
          %v330 = vand.u32 %v329, 127
          %vm331 = vcmp.eq.s32.totalorder %v330, 0
          %v332 = vsel %vm331, -1e+30, 0.0
          %vm333 = vcmask 64512
          %334 = vst.msk [vmem:[#allocation2] sm:$0xff] %vm333, %v332
          %vm335 = vcmask 7168
          %336 = vst.msk [vmem:[#allocation3] sm:$0xff] %vm335, 0
        $region56: #{tpu_custom_call.1} parent=51 // pred_fallthru
          _
        %v337 = vld [vmem:[%s315] sm:$0xff]
        %v338 = vld [vmem:[%s315 + $0x8] sm:$0xff]
        %v339 = vld [vmem:[%s315 + $0x10] sm:$0xff]
        %v340 = vld [vmem:[%s315 + $0x18] sm:$0xff]
        %v341 = vld [vmem:[%s315 + $0x20] sm:$0xff]
        %v342 = vld [vmem:[%s315 + $0x28] sm:$0xff]
        %v343 = vld [vmem:[%s315 + $0x30] sm:$0xff]
        %v344 = vld [vmem:[%s315 + $0x38] sm:$0xff]
        %v345 = vld [vmem:[%s315 + $0x40] sm:$0xff]
        %v346 = vld [vmem:[%s315 + $0x48] sm:$0xff]
        %v347 = vld [vmem:[%s315 + $0x50] sm:$0xff]
        %v348 = vld [vmem:[%s315 + $0x58] sm:$0xff]
        %v349 = vld [vmem:[%s315 + $0x60] sm:$0xff]
        %v350 = vld [vmem:[%s315 + $0x68] sm:$0xff]
        %v351 = vld [vmem:[%s315 + $0x70] sm:$0xff]
        %v352 = vld [vmem:[%s315 + $0x78] sm:$0xff]
        %vm353 = vcmask 523264
        %v355 = vsel %vm353, %v323, 0
        %v358 = vsel %vm353, %v337, 0
        %v361 = vsel %vm353, %v338, 0
        %v364 = vsel %vm353, %v339, 0
        %v367 = vsel %vm353, %v340, 0
        %v370 = vsel %vm353, %v341, 0
        %v373 = vsel %vm353, %v342, 0
        %v376 = vsel %vm353, %v343, 0
        %v379 = vsel %vm353, %v344, 0
        %v382 = vsel %vm353, %v345, 0
        %v385 = vsel %vm353, %v346, 0
        %v388 = vsel %vm353, %v347, 0
        %v391 = vsel %vm353, %v348, 0
        %v394 = vsel %vm353, %v349, 0
        %v397 = vsel %vm353, %v350, 0
        %v400 = vsel %vm353, %v351, 0
        %v403 = vsel %vm353, %v352, 0
        %405 = vmatprep.subr.mxu0 0.0
        %406 = vmatpush1.xpose.msra.mxu0 %v358
        %407 = vmatprep.subr.mxu0 0.0
        %408 = vmatpush1.xpose.msra.mxu0 %v361
        %409 = vmatprep.subr.mxu0 0.0
        %410 = vmatpush1.xpose.msra.mxu0 %v364
        %411 = vmatprep.subr.mxu0 0.0
        %412 = vmatpush1.xpose.msra.mxu0 %v367
        %413 = vmatprep.subr.mxu0 0.0
        %414 = vmatpush1.xpose.msra.mxu0 %v370
        %415 = vmatprep.subr.mxu0 0.0
        %416 = vmatpush1.xpose.msra.mxu0 %v373
        %417 = vmatprep.subr.mxu0 0.0
        %418 = vmatpush1.xpose.msra.mxu0 %v376
        %419 = vmatprep.subr.mxu0 0.0
        %420 = vmatpush1.xpose.msra.mxu0 %v379
        %421 = vmatprep.subr.mxu0 0.0
        %422 = vmatpush1.xpose.msra.mxu0 %v382
        %423 = vmatprep.subr.mxu0 0.0
        %424 = vmatpush1.xpose.msra.mxu0 %v385
        %425 = vmatprep.subr.mxu0 0.0
        %426 = vmatpush1.xpose.msra.mxu0 %v388
        %427 = vmatprep.subr.mxu0 0.0
        %428 = vmatpush1.xpose.msra.mxu0 %v391
        %429 = vmatprep.subr.mxu0 0.0
        %430 = vmatpush1.xpose.msra.mxu0 %v394
        %431 = vmatprep.subr.mxu0 0.0
        %432 = vmatpush1.xpose.msra.mxu0 %v397
        %433 = vmatprep.subr.mxu0 0.0
        %434 = vmatpush1.xpose.msra.mxu0 %v400
        %435 = vmatprep.subr.mxu0 0.0
        %436 = vmatpush1.xpose.msra.mxu0 %v403
        %437 = vmatprep.subr.mxu0 0.0
        %438 = vmatpush1.xpose.msra.mxu0 0.0
        %439 = vmatprep.subr.mxu0 0.0
        %440 = vmatpush1.xpose.msra.mxu0 0.0
        %441 = vmatprep.subr.mxu0 0.0
        %442 = vmatpush1.xpose.msra.mxu0 0.0
        %443 = vmatprep.subr.mxu0 0.0
        %444 = vmatpush1.xpose.msra.mxu0 0.0
        %445 = vmatprep.subr.mxu0 0.0
        %446 = vmatpush1.xpose.msra.mxu0 0.0
        %447 = vmatprep.subr.mxu0 0.0
        %448 = vmatpush1.xpose.msra.mxu0 0.0
        %449 = vmatprep.subr.mxu0 0.0
        %450 = vmatpush1.xpose.msra.mxu0 0.0
        %451 = vmatprep.subr.mxu0 0.0
        %452 = vmatpush1.xpose.msra.mxu0 0.0
        %453 = vmatprep.subr.mxu0 0.0
        %454 = vmatpush1.xpose.msra.mxu0 0.0
        %455 = vmatprep.subr.mxu0 0.0
        %456 = vmatpush1.xpose.msra.mxu0 0.0
        %457 = vmatprep.subr.mxu0 0.0
        %458 = vmatpush1.xpose.msra.mxu0 0.0
        %459 = vmatprep.subr.mxu0 0.0
        %460 = vmatpush1.xpose.msra.mxu0 0.0
        %461 = vmatprep.subr.mxu0 0.0
        %462 = vmatpush1.xpose.msra.mxu0 0.0
        %463 = vmatprep.subr.mxu0 0.0
        %464 = vmatpush1.xpose.msra.mxu0 0.0
        %465 = vmatprep.subr.mxu0 0.0
        %466 = vmatpush1.xpose.msra.mxu0 0.0
        %467 = vmatprep.subr.mxu0 0.0
        %468 = vmatpush1.xpose.msra.mxu0 0.0
        %469 = vmatprep.mubr.f32.mxu0 0.0
        %470 = vmatmul.mubr.f32.gmra.mrb[0].mxu0 %v355
        %v471 = vpop.f32.mrb[0].mxu0
        %v472 = vadd.f32 0.0, %v471
        %v473 = vpop.f32.mrb[0].mxu0
        %474 = vdwg.mxu0
        %v475 = vld [vmem:[%s5] sm:$0xff]
        %477 = vset.pattern.permute.xlu0 0
        %478 = vperm.xlu0 %477, %v475
        %v479 = vpop.permute.xlu0 %478
        %v481 = vmul.f32 %v472, %v479
        %v482 = vld [vmem:[%s319] sm:$0x1]
        %v484 = vlaneseq
        %v485 = vshrl.u32 %v484, 7
        %v486 = vsub.s32 0, %v485
        %v487 = vrot.slane %v482, %v486
        %v489 = vmul.f32 %v481, %v487
        %v490 = vmax.f32 %v489, -0.999
        %v491 = vmin.f32 %v490, 0.999
        %s492 = smul.u32 %s21, 128
        %v493 = vlaneseq
        %v494 = vand.u32 %v493, 127
        %v495 = vstv %s492
        %v496 = vadd.s32 %v495, %v494
        %497 = vset.pattern.permute.xlu0 0
        %498 = vperm.xlu0 %497, %v324
        %v499 = vpop.permute.xlu0 %498
        %vm500 = vcmp.eq.s32.totalorder %v496, %v499
        %v501 = vsel %vm500, %v472, %v491
        %v502 = vld [vmem:[%s322] sm:$0x1]
        %v504 = vlaneseq
        %v505 = vshrl.u32 %v504, 7
        %v506 = vsub.s32 0, %v505
        %v507 = vrot.slane %v502, %v506
        %v509 = vadd.f32 %v501, %v507
        %510 = vmax.xlane.f32.xlu0 %v509
        %v511 = vpop.xlane.xlu0 %510
        %v512 = vld [vmem:[#allocation2] sm:$0xff]
        %v513 = vmax.f32 %v512, %v511
        %v514 = vsub.f32 %v512, %v513
        %v515 = vmul.f32 %v514, 1.442695
        %v516 = vpow.pop %v515
        %518 = vrot.lane.b32.xlu0 %v516, 1
        %v519 = vpop.permute.xlu0 %518
        %v521 = vmul.f32 %v512, %v519
        %523 = vset.pattern.permute.xlu0 0
        %524 = vperm.xlu0 %523, %v513
        %v525 = vpop.permute.xlu0 %524
        %v527 = vsub.f32 %v509, %v525
        %v528 = vmul.f32 %v527, 1.442695
        %v529 = vpow.pop %v528
        %530 = vadd.xlane.f32.xlu0 %v529
        %v531 = vpop.xlane.xlu0 %530
        %v532 = vadd.f32 %v521, %v531
        %v533 = vsel %vm500, %v472, 0.0
        %534 = vadd.xlane.f32.xlu0 %v533
        %v535 = vpop.xlane.xlu0 %534
        %v536 = vadd.f32 %v512, %v535
        %537 = vadd.xlane.f32.xlu0 %v491
        %v538 = vpop.xlane.xlu0 %537
        %v539 = vadd.f32 %v512, %v538
        %vm540 = vcmp.eq.f32.partialorder %v509, %v511
        %v541 = vsel %vm540, %v496, 2147483647
        %v542 = vand.u32 %v541, 65535
        %v543 = vshra.s32 %v541, 16
        %v544 = vcvt.s32.f32 %v542
        %v545 = vcvt.s32.f32 %v543
        %546 = vmin.xlane.f32.xlu0 %v545
        %v547 = vpop.xlane.xlu0 %546
        %vm548 = vcmp.eq.f32.partialorder %v545, %v547
        %v549 = vsel %vm548, %v544, inf
        %550 = vmin.xlane.f32.xlu0 %v549
        %v551 = vpop.xlane.xlu0 %550
        %v552 = vcvt.f32.s32 %v551
        %v553 = vcvt.f32.s32 %v547
        %v554 = vshll.u32 %v553, 16
        %v555 = vadd.s32 %v554, %v552
        %vm556 = vcmp.gt.f32.partialorder %v511, %v512
        %v557 = vld [vmem:[#allocation3] sm:$0xff]
        %v558 = vsel %vm556, %v555, %v557
        %vm559 = vcmask 7168
        %560 = vst.msk [vmem:[#allocation2] sm:$0xff] %vm559, %v513
        %vm561 = vcmask 15368
        %562 = vst.msk [vmem:[#allocation2] sm:$0xff] %vm561, %v532
        %vm563 = vcmask 23568
        %564 = vst.msk [vmem:[#allocation2] sm:$0xff] %vm563, %v536
        %vm565 = vcmask 31768
        %566 = vst.msk [vmem:[#allocation2] sm:$0xff] %vm565, %v539
        %567 = vst.msk [vmem:[#allocation3] sm:$0xff] %vm559, %v558
        %p568 = scmp.eq.s32.totalorder %s21, 1
        // Predicated region
        $region57: #{tpu_custom_call.1} parent=51 // pred_check
          %p569 = pneg %p568
        $region58: #{tpu_custom_call.1} parent=51 // pred_check_branch
          %571 = sbr.rel (%p569) target = $region60
        $region59: #{tpu_custom_call.1} parent=51 // pred_region
          %s572 = sld [smem:[#allocation4]]
          %v573 = vlog2.pop %v532
          %v574 = vmul.f32 %v573, 0.6931472
          %576 = vrot.lane.b32.xlu0 %v574, 127
          %v577 = vpop.permute.xlu0 %576
          %v579 = vadd.f32 %v513, %v577
          %581 = vrot.lane.b32.xlu0 %v536, 126
          %v582 = vpop.permute.xlu0 %581
          %v584 = vsub.f32 %v579, %v582
          %v585 = vld [vmem:[%s4] sm:$0xff]
          %v586 = vstv %s572
          %v587 = vmul.f32 %v586, %v585
          %v588 = vsub.f32 200.0, %v539
          %590 = vrot.lane.b32.xlu0 %v588, 125
          %v591 = vpop.permute.xlu0 %590
          %v593 = vmul.f32 %v587, %v591
          %s594 = sadd.f32 %s572, 1.0
          %s595 = smul.f32 %s594, 200.0
          %v596 = vstv %s595
          %v597 = vadd.f32 %v593, %v596
          %v598 = vmul.f32 %v584, %v597
          %v599 = vsel %vm559, %v598, 0.0
          %600 = vadd.xlane.f32.xlu0 %v599
          %v601 = vpop.xlane.xlu0 %600
          %v602 = vrot.slane %v601, 4
          %v603 = vadd.f32 %v601, %v602
          %v604 = vrot.slane %v603, 2
          %v605 = vadd.f32 %v603, %v604
          %v606 = vrot.slane %v605, 1
          %v607 = vadd.f32 %v605, %v606
          %s608 = vtos %v607
          %v609 = vrcp.pop 1600.0
          %s610 = vtos %v609
          %s611 = smul.f32 %s608, %s610
          %s612 = scalar_lea.smem [#allocation5], 0
          %613 = sst [smem:[%s612]] %s611
          %vm614 = vcmp.eq.s32.totalorder %v558, %v324
          %v615 = vsel %vm614, 1, 0
          %v616 = vcvt.s32.f32 %v615
          %v617 = vsel %vm559, %v616, 0.0
          %618 = vadd.xlane.f32.xlu0 %v617
          %v619 = vpop.xlane.xlu0 %618
          %v620 = vrot.slane %v619, 4
          %v621 = vadd.f32 %v619, %v620
          %v622 = vrot.slane %v621, 2
          %v623 = vadd.f32 %v621, %v622
          %v624 = vrot.slane %v623, 1
          %v625 = vadd.f32 %v623, %v624
          %s626 = vtos %v625
          %s627 = smul.f32 %s626, 100.0
          %v628 = vrcp.pop 8.0
          %s629 = vtos %v628
          %s630 = smul.f32 %s627, %s629
          %s631 = scalar_lea.smem [#allocation5], 1
          %632 = sst [smem:[%s631]] %s630
        $region60: #{tpu_custom_call.1} parent=51 // pred_fallthru
          _
        // Predicated region
        $region61: #{tpu_custom_call.1} parent=51 // pred_check
          %p633 = pneg %p217
        $region62: #{tpu_custom_call.1} parent=51 // pred_check_branch
          %635 = sbr.rel (%p633) target = $region64
        $region63: #{tpu_custom_call.1} parent=51 // pred_region
          %s637 = ssub.s32 16, 16
          %638 = vsyncadd [#allocation6], %s637
          %641 = dma.smem_to_hbm [#allocation5], 16, %s8, [#allocation6]
        $region64: #{tpu_custom_call.1} parent=51 // pred_fallthru
          _
        // Predicated region
        $region65: #{tpu_custom_call.1} parent=51 // pred_check
          %p642 = pneg %p217
        $region66: #{tpu_custom_call.1} parent=51 // pred_check_branch
          %644 = sbr.rel (%p642) target = $region68
        $region67: #{tpu_custom_call.1} parent=51 // pred_region
          %645 = dma.done [#allocation6], 16
        $region68: #{tpu_custom_call.1} parent=51 // pred_fallthru
          _
        %646 = sfence
      $region52: #{tpu_custom_call.1} parent=5 // pred_fallthru
        _
      %p647 = scmp.le.s32.totalorder 2, %s16
      // Predicated region
      $region69: #{tpu_custom_call.1} parent=5 // pred_check
        %p648 = pneg %p647
      $region70: #{tpu_custom_call.1} parent=5 // pred_check_branch
        %650 = sbr.rel (%p648) target = $region72
      $region71: #{tpu_custom_call.1} parent=5 // pred_region
        %s651 = ssub.s32 %s16, 2
      $region72: #{tpu_custom_call.1} parent=5 // pred_fallthru
        _
    $region6: #{tpu_custom_call.1} parent=1 // loop_footer
      %s20 = sadd.s32 1, %s16
    $region7: #{tpu_custom_call.1} parent=1 // loop_footer_branch
      %15 = sbr.rel target = $region3
    $region8: #{tpu_custom_call.1} parent=1 // loop_exit
      _
    %652 = vsyncpa [#allocation6], 1
    %s653 = scalar_lea.sflag [#allocation6], 1
    %654 = vsyncpa %s653, 1

</llo_original>
